<compile_context>
chip_gen: v5e
topology: v5e:2x2
jax: 0.10.0
libtpu: 0.0.40
codegen_flags: <defaults>
</compile_context>

<pallas_src>
import functools

import jax
import jax.numpy as jnp
from jax.experimental import pallas as pl
from jax.experimental.pallas import tpu as pltpu

BN_EPS = 1e-5
_MiB = 1 << 20


def _round_up(x, m):
    return ((x + m - 1) // m) * m


# ----------------------------------------------------------------------------
# Kernel
# ----------------------------------------------------------------------------
def _classifier_kernel(
    x_ref,      # (TB, F)        VMEM  activation tile (streamed)
    w1_ref,     # (F, H_pad)     VMEM  BN-folded W1, compute dtype (resident)
    b1_ref,     # (1, H_pad)     VMEM  BN-folded b1, f32 (resident)
    w2_ref,     # (1, H_pad)     VMEM  W2 as a row, f32 (resident)
    b2_ref,     # (1, 1)         SMEM  scalar bias of linear_2
    out_ref,    # (TB//128, 128) VMEM  lane-dense output slab
    *,
    out_scale,      # python float (output_range, fixed non-trainable)
    out_shift,      # python float (output_shift, fixed non-trainable)
    compute_dtype,  # MXU operand dtype (bf16 default; epilogue stays f32)
):
    # BatchNorm already folded into w1/b1; Dropout is identity at inference.
    # TODO(synk): training-mode dropout (RNG mask) and batch-stat BN intentionally omitted.
    x = x_ref[...]
    if x.dtype != compute_dtype:
        x = x.astype(compute_dtype)          # per-tile cast, no extra HBM traffic

    # --- Linear 1 (+ folded BN) + ReLU on the MXU, f32 accumulate/epilogue ---
    y1 = jnp.dot(x, w1_ref[...], preferred_element_type=jnp.float32)
    y1 = jnp.maximum(y1 + b1_ref[...], 0.0)

    # --- Linear 2 (out_features = 1): VPU multiply + XLU lane reduction ---
    z = jnp.sum(y1 * w2_ref[...], axis=-1, keepdims=True) + b2_ref[0, 0]  # (TB, 1)

    # --- lane-dense epilogue: relayout (TB,1) -> (TB//128,128) on the XLU, then
    #     sigmoid (EUP) + fixed affine + unmasked dense stores ---
    tb = z.shape[0]
    zd = z.reshape(tb // 128, 128)
    yd = jax.nn.sigmoid(zd)
    out_ref[...] = (yd * out_scale + out_shift).astype(out_ref.dtype)


# ----------------------------------------------------------------------------
# Host-side (per-weight, done once) preprocessing: fold BN, pad hidden, cast W1.
# ----------------------------------------------------------------------------
def prepare_classifier_params(params, compute_dtype=jnp.bfloat16):
    gamma = params["gamma"].astype(jnp.float32)          # (1, F)
    beta = params["beta"].astype(jnp.float32)            # (1, F)
    mean = params["running_mean"].astype(jnp.float32)    # (1, F)
    var = params["running_var"].astype(jnp.float32)      # (1, F)
    w1 = params["w1"].astype(jnp.float32)                # (F, H)
    b1 = params["b1"].astype(jnp.float32)                # (1, H)
    w2 = params["w2"].astype(jnp.float32)                # (H, 1)
    b2 = params["b2"].astype(jnp.float32)                # (1, 1)

    # Fold BN (eval mode) into linear_1:  normed = x*scale + shift
    scale = gamma * jax.lax.rsqrt(var + BN_EPS)           # (1, F)
    shift = beta - mean * scale                           # (1, F)
    w1_folded = w1 * scale.reshape(-1, 1)                 # (F, H)
    b1_folded = b1 + shift @ w1                           # (1, H)

    # Zero-pad hidden dim to a multiple of 128 so y1 / w2 are lane-dense.
    F, H = w1.shape
    h_pad = _round_up(H, 128)
    if h_pad != H:
        pad = h_pad - H
        w1_folded = jnp.pad(w1_folded, ((0, 0), (0, pad)))
        b1_folded = jnp.pad(b1_folded, ((0, 0), (0, pad)))
        w2_row = jnp.pad(w2.T, ((0, 0), (0, pad)))         # (1, H_pad)
    else:
        w2_row = w2.T

    return {
        # MXU operand stored once in compute dtype (no per-grid-step cast of w1).
        "w1": w1_folded.astype(compute_dtype),             # (F, H_pad)
        # Epilogue operands stay f32 (v5e has no bf16 VALU/EUP).
        "b1": b1_folded,                                    # (1, H_pad) f32
        "w2_row": w2_row,                                   # (1, H_pad) f32
        "b2": b2.reshape(1, 1),                             # (1, 1) -> SMEM scalar
        # fixed non-trainable constants, baked into the kernel at trace time
        "out_scale": float(params["output_range"].reshape(-1)[0]),
        "out_shift": float(params["output_shift"].reshape(-1)[0]),
    }


# ----------------------------------------------------------------------------
# Generation-aware VMEM / tile planning
# ----------------------------------------------------------------------------
def _vmem_plan():
    """Per-generation plan: tile budget, scoped-VMEM limit, min grid, x buffering."""
    kind = ""
    try:
        kind = jax.devices()[0].device_kind.lower()
    except Exception:
        pass
    if "v5" in kind:   # v5e: 16 MiB default scoped VMEM, ~0.82 TB/s HBM, 1 TC
        return dict(tile_budget=12 * _MiB, vmem_limit=32 * _MiB,
                    min_grid=1, x_buffers=2)
    if "v7" in kind:   # v7x: 64 MiB/TC physical, 2 TCs -> keep grid>=4, <~40 MiB used
        return dict(tile_budget=28 * _MiB, vmem_limit=48 * _MiB,
                    min_grid=4, x_buffers=3)
    if "v6" in kind:   # v6e: 128 MiB physical -> go big, few grid steps
        return dict(tile_budget=64 * _MiB, vmem_limit=100 * _MiB,
                    min_grid=1, x_buffers=2)
    return dict(tile_budget=12 * _MiB, vmem_limit=32 * _MiB,
                min_grid=1, x_buffers=2)   # conservative default


def _choose_block_rows(b_rows, feat, hidden_pad, plan, x_bytes, w_bytes,
                       needs_cast, cap=32768):
    """Largest batch tile (multiple of 128) whose pipelined footprint fits."""
    f_lanes = _round_up(feat, 128)     # VMEM lane padding of the x tile
    f_sub = _round_up(feat, 8)         # sublane padding of resident w1
    weight_bytes = f_sub * hidden_pad * w_bytes + 2 * hidden_pad * 4 + 1024
    per_row = (plan["x_buffers"] * f_lanes * x_bytes        # pipelined x tiles
               + (f_lanes * 2 if needs_cast else 0)         # bf16 cast temp of x
               + 2 * hidden_pad * 4                         # f32 y1 + y1*w2 temp
               + 2 * 4)                                      # lane-dense out, dbl-buf
    avail = max(plan["tile_budget"] - weight_bytes, 128 * per_row)
    tb = int(avail // per_row)
    tb = max(128, (tb // 128) * 128)
    tb = min(tb, cap)
    tb = min(tb, _round_up(b_rows, 128))
    if plan["min_grid"] > 1:
        # v7x: keep at least min_grid blocks so both TensorCores get work.
        tb = min(tb, max(128, (pl.cdiv(b_rows, plan["min_grid"]) // 128) * 128))
    return tb


# ----------------------------------------------------------------------------
# Wrapper
# ----------------------------------------------------------------------------
def classifier_forward(x, prep, *, block_rows=None):
    """x: (B, fusion_dim). prep: output of prepare_classifier_params."""
    B, F = x.shape
    Fw, H_pad = prep["w1"].shape
    assert Fw == F, (Fw, F)
    compute_dtype = prep["w1"].dtype

    plan = _vmem_plan()
    b_pad = _round_up(B, 128)
    needs_cast = x.dtype != compute_dtype

    if block_rows is not None:
        tb = max(128, _round_up(block_rows, 128))
    else:
        tb = _choose_block_rows(
            b_pad, F, H_pad, plan,
            x_bytes=x.dtype.itemsize,
            w_bytes=jnp.dtype(compute_dtype).itemsize,
            needs_cast=needs_cast)
    tb = min(tb, b_pad)
    nb = tb // 128

    # Pad the batch only when it is not already 128-aligned (the pad is an extra
    # HBM copy of x; 128-aligned production batches skip it entirely).
    # TODO(synk): rely on a partial last block to avoid this copy for unaligned B.
    x_in = x if b_pad == B else jnp.pad(x, ((0, b_pad - B), (0, 0)))

    grid = (pl.cdiv(b_pad, tb),)

    x_spec_kwargs = {}
    if plan["x_buffers"] != 2:
        # v7x: small per-tile transfers -> hide DMA issue latency with a 3rd buffer.
        x_spec_kwargs["pipeline_mode"] = pl.Buffered(plan["x_buffers"])

    kernel = functools.partial(
        _classifier_kernel,
        out_scale=prep["out_scale"],
        out_shift=prep["out_shift"],
        compute_dtype=compute_dtype,
    )

    out = pl.pallas_call(
        kernel,
        out_shape=jax.ShapeDtypeStruct((b_pad // 128, 128), jnp.float32),
        grid=grid,
        in_specs=[
            pl.BlockSpec((tb, F), lambda i: (i, 0), **x_spec_kwargs),   # x streamed
            pl.BlockSpec((F, H_pad), lambda i: (0, 0)),    # w1: VMEM-resident
            pl.BlockSpec((1, H_pad), lambda i: (0, 0)),    # b1: VMEM-resident
            pl.BlockSpec((1, H_pad), lambda i: (0, 0)),    # w2 row: VMEM-resident
            pl.BlockSpec(memory_space=pltpu.MemorySpace.SMEM),   # b2 scalar
        ],
        out_specs=pl.BlockSpec((nb, 128), lambda i: (i, 0)),   # lane-dense slab
        compiler_params=pltpu.CompilerParams(
            dimension_semantics=("parallel",),             # megacore batch split (v7x)
            vmem_limit_bytes=plan["vmem_limit"],
        ),
    )(x_in, prep["w1"], prep["b1"], prep["w2_row"], prep["b2"])

    # (b_pad//128, 128) slab -> (b_pad, 1); padded rows are garbage and sliced off.
    return out.reshape(-1, 1)[:B]


# ----------------------------------------------------------------------------
# Synthetic parameters + pure-JAX reference
# ----------------------------------------------------------------------------
def init_params(key, fusion_dim, clf_hidden_dim):
    """Deterministic synthetic parameters matching classifier.__init__ shapes."""
    k_g, k_b, k_m, k_v, k_w1, k_b1, k_w2, k_b2 = jax.random.split(key, 8)
    f, h = fusion_dim, clf_hidden_dim
    return {
        # BatchNorm1d(fusion_dim)
        "gamma":        jax.random.normal(k_g, (1, f), jnp.float32) * 0.1 + 1.0,
        "beta":         jax.random.normal(k_b, (1, f), jnp.float32) * 0.1,
        "running_mean": jax.random.normal(k_m, (1, f), jnp.float32) * 0.1,
        "running_var":  jax.nn.softplus(jax.random.normal(k_v, (1, f), jnp.float32)) + 0.5,
        # Linear(fusion_dim, clf_hidden_dim) stored as (in, out)
        "w1": jax.random.normal(k_w1, (f, h), jnp.float32) * (1.0 / jnp.sqrt(f)),
        "b1": jax.random.normal(k_b1, (1, h), jnp.float32) * 0.01,
        # Linear(clf_hidden_dim, 1)
        "w2": jax.random.normal(k_w2, (h, 1), jnp.float32) * (1.0 / jnp.sqrt(h)),
        "b2": jax.random.normal(k_b2, (1, 1), jnp.float32) * 0.01,
        # fixed, non-trainable affine output parameters
        "output_range": jnp.array([[6.0]], jnp.float32),
        "output_shift": jnp.array([[-3.0]], jnp.float32),
    }


def reference_forward(x, p):
    """Pure-JAX reference (unfolded BN, eval mode) for correctness check."""
    normed = (x - p["running_mean"]) * jax.lax.rsqrt(p["running_var"] + BN_EPS) \
             * p["gamma"] + p["beta"]
    y1 = jnp.maximum(normed @ p["w1"] + p["b1"], 0.0)
    y2 = jax.nn.sigmoid(y1 @ p["w2"] + p["b2"])
    return y2 * p["output_range"][0, 0] + p["output_shift"][0, 0]


if __name__ == "__main__":
    key = jax.random.PRNGKey(0)
    k_x, k_p, k_x2 = jax.random.split(key, 3)

    batch, fusion_dim, clf_hidden_dim = 8, 32, 16
    x = jax.random.normal(k_x, (batch, fusion_dim), jnp.float32)
    params = init_params(k_p, fusion_dim, clf_hidden_dim)

    # --- f32 MXU-operand path: tight check against the unfolded reference ---
    prep_f32 = prepare_classifier_params(params, compute_dtype=jnp.float32)
    out_f32 = jax.block_until_ready(classifier_forward(x, prep_f32))
    ref = reference_forward(x, params)
    assert out_f32.shape == (batch, 1), out_f32.shape
    assert jnp.allclose(out_f32, ref, atol=2e-5, rtol=1e-4), (out_f32, ref)

    # --- default bf16 MXU-operand path: multi-block grid (exercises pipelining) ---
    batch2 = 300
    x2 = jax.random.normal(k_x2, (batch2, fusion_dim), jnp.float32)
    prep_bf16 = prepare_classifier_params(params)        # bf16 default
    out_bf16 = jax.block_until_ready(
        classifier_forward(x2, prep_bf16, block_rows=128))   # grid = 3 blocks
    ref2 = reference_forward(x2, params)
    assert out_bf16.shape == (batch2, 1), out_bf16.shape
    assert jnp.allclose(out_bf16, ref2, atol=6e-2, rtol=6e-2), (out_bf16, ref2)

    print("KERNEL_OK")
</pallas_src>

<mosaic_0001>
module attributes {stable_mosaic.version = 11 : i64} {
  func.func @_classifier_kernel(%arg0: i32, %arg1: memref<128x32xf32, #tpu.memory_space<vmem>>, %arg2: memref<32x128xf32, #tpu.memory_space<vmem>>, %arg3: memref<1x128xf32, #tpu.memory_space<vmem>>, %arg4: memref<1x128xf32, #tpu.memory_space<vmem>>, %arg5: memref<1x1xf32, #tpu.memory_space<smem>>, %arg6: memref<1x128xf32, #tpu.memory_space<vmem>>) attributes {dimension_semantics = [#tpu.dimension_semantics<parallel>], iteration_bounds = array<i64: 1>, scalar_prefetch = 0 : i64, scratch_operands = 0 : i64, tpu.core_type = #tpu.core_type<tc>, window_params = [{transform_indices = @transform_0, window_bounds = array<i64: 128, 32>}, {pipeline_mode = #tpu.pipeline_mode<synchronous>, transform_indices = @transform_1, window_bounds = array<i64: 32, 128>}, {pipeline_mode = #tpu.pipeline_mode<synchronous>, transform_indices = @transform_2, window_bounds = array<i64: 1, 128>}, {pipeline_mode = #tpu.pipeline_mode<synchronous>, transform_indices = @transform_3, window_bounds = array<i64: 1, 128>}, {transform_indices = @transform_4, window_bounds = array<i64: 1, 1>}, {transform_indices = @transform_5, window_bounds = array<i64: 1, 128>}]} {
    %c0 = arith.constant 0 : index
    %c0_0 = arith.constant 0 : index
    %0 = vector.load %arg1[%c0, %c0_0] : memref<128x32xf32, #tpu.memory_space<vmem>>, vector<128x32xf32>
    %c0_1 = arith.constant 0 : index
    %c0_2 = arith.constant 0 : index
    %1 = vector.load %arg2[%c0_1, %c0_2] : memref<32x128xf32, #tpu.memory_space<vmem>>, vector<32x128xf32>
    %cst = arith.constant dense<0.000000e+00> : vector<128x128xf32>
    %2 = tpu.matmul %0, %1, %cst {dimension_numbers = #tpu.dot_dimension_numbers<[1], [0], [0], [1], [0, 0, 1, 1], [], []>} : vector<128x32xf32>, vector<32x128xf32>, vector<128x128xf32> -> vector<128x128xf32>
    %c0_3 = arith.constant 0 : index
    %c0_4 = arith.constant 0 : index
    %3 = vector.load %arg3[%c0_3, %c0_4] : memref<1x128xf32, #tpu.memory_space<vmem>>, vector<1x128xf32>
    %4 = vector.broadcast %3 : vector<1x128xf32> to vector<128x128xf32>
    %5 = arith.addf %2, %4 : vector<128x128xf32>
    %cst_5 = arith.constant 0.000000e+00 : f32
    %6 = vector.broadcast %cst_5 : f32 to vector<128x128xf32>
    %7 = arith.maximumf %5, %6 : vector<128x128xf32>
    %c0_6 = arith.constant 0 : index
    %c0_7 = arith.constant 0 : index
    %8 = vector.load %arg4[%c0_6, %c0_7] : memref<1x128xf32, #tpu.memory_space<vmem>>, vector<1x128xf32>
    %9 = vector.broadcast %8 : vector<1x128xf32> to vector<128x128xf32>
    %10 = arith.mulf %7, %9 : vector<128x128xf32>
    %cst_8 = arith.constant dense<0.000000e+00> : vector<128xf32>
    %11 = vector.multi_reduction <add>, %10, %cst_8 [1] : vector<128x128xf32> to vector<128xf32>
    %12 = vector.shape_cast %11 : vector<128xf32> to vector<128x1xf32>
    %c0_9 = arith.constant 0 : index
    %c0_10 = arith.constant 0 : index
    %13 = memref.load %arg5[%c0_9, %c0_10] : memref<1x1xf32, #tpu.memory_space<smem>>
    %14 = vector.broadcast %13 : f32 to vector<128x1xf32>
    %15 = arith.addf %12, %14 : vector<128x1xf32>
    %16 = vector.shape_cast %15 : vector<128x1xf32> to vector<1x128xf32>
    %17 = arith.negf %16 : vector<1x128xf32>
    %18 = math.exp %17 : vector<1x128xf32>
    %cst_11 = arith.constant 1.000000e+00 : f32
    %19 = vector.broadcast %cst_11 : f32 to vector<1x128xf32>
    %20 = arith.addf %19, %18 : vector<1x128xf32>
    %21 = arith.divf %19, %20 : vector<1x128xf32>
    %cst_12 = arith.constant 6.000000e+00 : f32
    %22 = vector.broadcast %cst_12 : f32 to vector<1x128xf32>
    %23 = arith.mulf %21, %22 : vector<1x128xf32>
    %cst_13 = arith.constant -3.000000e+00 : f32
    %24 = vector.broadcast %cst_13 : f32 to vector<1x128xf32>
    %25 = arith.addf %23, %24 : vector<1x128xf32>
    %c0_14 = arith.constant 0 : index
    %c0_15 = arith.constant 0 : index
    %26 = vector.load %arg6[%c0_14, %c0_15] : memref<1x128xf32, #tpu.memory_space<vmem>>, vector<1x128xf32>
    tpu.vector_store %arg6[%c0_14, %c0_15], %25 {strides = array<i32>} : memref<1x128xf32, #tpu.memory_space<vmem>>, vector<1x128xf32>,
    return
  }
  func.func @transform_0(%arg0: i32) -> (i32, i32) {
    %c0_i32 = arith.constant 0 : i32
    %c0_i32_0 = arith.constant 0 : i32
    return %arg0, %c0_i32 : i32, i32
  }
  func.func @transform_1(%arg0: i32) -> (i32, i32) {
    %c0_i32 = arith.constant 0 : i32
    %c0_i32_0 = arith.constant 0 : i32
    %c0_i32_1 = arith.constant 0 : i32
    return %c0_i32, %c0_i32_0 : i32, i32
  }
  func.func @transform_2(%arg0: i32) -> (i32, i32) {
    %c0_i32 = arith.constant 0 : i32
    %c0_i32_0 = arith.constant 0 : i32
    %c0_i32_1 = arith.constant 0 : i32
    return %c0_i32, %c0_i32_0 : i32, i32
  }
  func.func @transform_3(%arg0: i32) -> (i32, i32) {
    %c0_i32 = arith.constant 0 : i32
    %c0_i32_0 = arith.constant 0 : i32
    %c0_i32_1 = arith.constant 0 : i32
    return %c0_i32, %c0_i32_0 : i32, i32
  }
  func.func @transform_4(%arg0: i32) -> (i32, i32) {
    %c0_i32 = arith.constant 0 : i32
    %c0_i32_0 = arith.constant 0 : i32
    %c0_i32_1 = arith.constant 0 : i32
    return %c0_i32, %c0_i32_0 : i32, i32
  }
  func.func @transform_5(%arg0: i32) -> (i32, i32) {
    %c0_i32 = arith.constant 0 : i32
    %c0_i32_0 = arith.constant 0 : i32
    return %arg0, %c0_i32 : i32, i32
  }
}

</mosaic_0001>

<llo_original>
// kernel: tpu_custom_call.1
$region0: #{tpu_custom_call.1}
  #allocation0 [shape = 'u32[]', space=smem, size = 0x4, offset = 0x4, fixed_abs, tag = 'smem constant byte address 0x4 - core index']
  #allocation1 [shape = 'u32[72,128]{1,0:T(1,128)}', space=vmem, size = 0x9000, scoped, tag = 'internal scratch']
  #allocation2 [shape = 'f32[1,1]{1,0:T(1,128)S(6)}', space=smem, size = 0x200, scoped, tag = 'scoped memory for tpu_custom_call.1']
  %s0 = inlined_call_operand.vmem [shape: f32[128,32], index: 0, kind: input, shape index: {}]
  %s1 = inlined_call_operand.vmem [shape: f32[32,128], index: 1, kind: input, shape index: {}]
  %s2 = inlined_call_operand.vmem [shape: f32[1,128], index: 2, kind: input, shape index: {}]
  %s3 = inlined_call_operand.vmem [shape: f32[1,128], index: 3, kind: input, shape index: {}]
  %s4 = inlined_call_operand.<no memory space> [shape: f32[1,1], index: 4, kind: input, shape index: {}]
  %s5 = inlined_call_operand.hbm [shape: f32[1,128], index: 5, kind: output, shape index: {}]
  %s6 = sld [smem:[#allocation0]]
  $region30: #{tpu_custom_call.1} parent=0
    _
  %s8 = ssub.s32 1, %s6
  %s9 = scalar_select 0, %s8, %s6
  %10 = sst [smem:[#allocation2]] %s4
  $region1: #{tpu_custom_call.1} parent=0
    #allocation3 [shape = 'u8[512]{0}', space=vmem, size = 0x400, scoped, tag = 'output window, operand 0, single buffered']
    #allocation4 [shape = 's32[1]{0}', space=sflag, size = 0x4, scoped, tag = 'scoped memory for tpu_custom_call.1']
    %11 = vsyncpa [#allocation4], 0
    // Predicated region
    $region2: #{tpu_custom_call.1} parent=1 // pred_check
      _
    $region3: #{tpu_custom_call.1} parent=1 // pred_check_branch
      %13 = sbr.rel (0) target = $region5
    $region4: #{tpu_custom_call.1} parent=1 // pred_region
      _
    $region5: #{tpu_custom_call.1} parent=1 // pred_fallthru
      _
    // Predicated region
    $region6: #{tpu_custom_call.1} parent=1 // pred_check
      _
    $region7: #{tpu_custom_call.1} parent=1 // pred_check_branch
      %15 = sbr.rel (0) target = $region9
    $region8: #{tpu_custom_call.1} parent=1 // pred_region
      _
    $region9: #{tpu_custom_call.1} parent=1 // pred_fallthru
      _
    // Predicated region
    $region10: #{tpu_custom_call.1} parent=1 // pred_check
      _
    $region11: #{tpu_custom_call.1} parent=1 // pred_check_branch
      %17 = sbr.rel (0) target = $region13
    $region12: #{tpu_custom_call.1} parent=1 // pred_region
      _
    $region13: #{tpu_custom_call.1} parent=1 // pred_fallthru
      _
    // Predicated region
    $region14: #{tpu_custom_call.1} parent=1 // pred_check
      _
    $region15: #{tpu_custom_call.1} parent=1 // pred_check_branch
      %19 = sbr.rel (0) target = $region17
    $region16: #{tpu_custom_call.1} parent=1 // pred_region
      _
    $region17: #{tpu_custom_call.1} parent=1 // pred_fallthru
      _
    // Predicated region
    $region18: #{tpu_custom_call.1} parent=1 // pred_check
      _
    $region19: #{tpu_custom_call.1} parent=1 // pred_check_branch
      %21 = sbr.rel (0) target = $region21
    $region20: #{tpu_custom_call.1} parent=1 // pred_region
      _
    $region21: #{tpu_custom_call.1} parent=1 // pred_fallthru
      _
    %v22 = vld [vmem:[%s0] sm:$0xff]
    %v23 = vld [vmem:[%s0 + $0x8] sm:$0xff]
    %v24 = vld [vmem:[%s0 + $0x10] sm:$0xff]
    %v25 = vld [vmem:[%s0 + $0x18] sm:$0xff]
    %v26 = vld [vmem:[%s0 + $0x20] sm:$0xff]
    %v27 = vld [vmem:[%s0 + $0x28] sm:$0xff]
    %v28 = vld [vmem:[%s0 + $0x30] sm:$0xff]
    %v29 = vld [vmem:[%s0 + $0x38] sm:$0xff]
    %v30 = vld [vmem:[%s0 + $0x40] sm:$0xff]
    %v31 = vld [vmem:[%s0 + $0x48] sm:$0xff]
    %v32 = vld [vmem:[%s0 + $0x50] sm:$0xff]
    %v33 = vld [vmem:[%s0 + $0x58] sm:$0xff]
    %v34 = vld [vmem:[%s0 + $0x60] sm:$0xff]
    %v35 = vld [vmem:[%s0 + $0x68] sm:$0xff]
    %v36 = vld [vmem:[%s0 + $0x70] sm:$0xff]
    %v37 = vld [vmem:[%s0 + $0x78] sm:$0xff]
    %v38 = vld [vmem:[%s1] sm:$0xff]
    %v39 = vld [vmem:[%s1 + $0x8] sm:$0xff]
    %v40 = vld [vmem:[%s1 + $0x10] sm:$0xff]
    %v41 = vld [vmem:[%s1 + $0x18] sm:$0xff]
    %v42 = vld [vmem:[%s2] sm:$0x1]
    %v44 = vperm.slane %v42, 0
    %vm46 = vcmask 261120
    %v48 = vsel %vm46, %v22, 0
    %v51 = vsel %vm46, %v23, 0
    %v54 = vsel %vm46, %v24, 0
    %v57 = vsel %vm46, %v25, 0
    %v60 = vsel %vm46, %v26, 0
    %v63 = vsel %vm46, %v27, 0
    %v66 = vsel %vm46, %v28, 0
    %v69 = vsel %vm46, %v29, 0
    %v72 = vsel %vm46, %v30, 0
    %v75 = vsel %vm46, %v31, 0
    %v78 = vsel %vm46, %v32, 0
    %v81 = vsel %vm46, %v33, 0
    %v84 = vsel %vm46, %v34, 0
    %v87 = vsel %vm46, %v35, 0
    %v90 = vsel %vm46, %v36, 0
    %v93 = vsel %vm46, %v37, 0
    %95 = vmatpush.msra.mxu0 0.0
    %96 = vmatpush.msra.mxu0 0.0
    %97 = vmatpush.msra.mxu0 0.0
    %98 = vmatpush.msra.mxu0 0.0
    %99 = vmatpush.msra.mxu0 0.0
    %100 = vmatpush.msra.mxu0 0.0
    %101 = vmatpush.msra.mxu0 0.0
    %102 = vmatpush.msra.mxu0 0.0
    %103 = vmatpush.msra.mxu0 0.0
    %104 = vmatpush.msra.mxu0 0.0
    %105 = vmatpush.msra.mxu0 0.0
    %106 = vmatpush.msra.mxu0 0.0
    %107 = vmatpush.msra.mxu0 %v41
    %108 = vmatpush.msra.mxu0 %v40
    %109 = vmatpush.msra.mxu0 %v39
    %110 = vmatpush.msra.mxu0 %v38
    %111 = vmatmul.f32.gmra.mxu0 %v48
    %v112 = vpop.f32.mrf.mxu0
    %v113 = vadd.f32 %v44, %v112
    %114 = vmatmul.f32.gmra.mxu0 %v51
    %v115 = vpop.f32.mrf.mxu0
    %v116 = vadd.f32 %v44, %v115
    %117 = vmatmul.f32.gmra.mxu0 %v54
    %v118 = vpop.f32.mrf.mxu0
    %v119 = vadd.f32 %v44, %v118
    %120 = vmatmul.f32.gmra.mxu0 %v57
    %v121 = vpop.f32.mrf.mxu0
    %v122 = vadd.f32 %v44, %v121
    %123 = vmatmul.f32.gmra.mxu0 %v60
    %v124 = vpop.f32.mrf.mxu0
    %v125 = vadd.f32 %v44, %v124
    %126 = vmatmul.f32.gmra.mxu0 %v63
    %v127 = vpop.f32.mrf.mxu0
    %v128 = vadd.f32 %v44, %v127
    %129 = vmatmul.f32.gmra.mxu0 %v66
    %v130 = vpop.f32.mrf.mxu0
    %v131 = vadd.f32 %v44, %v130
    %132 = vmatmul.f32.gmra.mxu0 %v69
    %v133 = vpop.f32.mrf.mxu0
    %v134 = vadd.f32 %v44, %v133
    %135 = vmatmul.f32.gmra.mxu0 %v72
    %v136 = vpop.f32.mrf.mxu0
    %v137 = vadd.f32 %v44, %v136
    %138 = vmatmul.f32.gmra.mxu0 %v75
    %v139 = vpop.f32.mrf.mxu0
    %v140 = vadd.f32 %v44, %v139
    %141 = vmatmul.f32.gmra.mxu0 %v78
    %v142 = vpop.f32.mrf.mxu0
    %v143 = vadd.f32 %v44, %v142
    %144 = vmatmul.f32.gmra.mxu0 %v81
    %v145 = vpop.f32.mrf.mxu0
    %v146 = vadd.f32 %v44, %v145
    %147 = vmatmul.f32.gmra.mxu0 %v84
    %v148 = vpop.f32.mrf.mxu0
    %v149 = vadd.f32 %v44, %v148
    %150 = vmatmul.f32.gmra.mxu0 %v87
    %v151 = vpop.f32.mrf.mxu0
    %v152 = vadd.f32 %v44, %v151
    %153 = vmatmul.f32.gmra.mxu0 %v90
    %v154 = vpop.f32.mrf.mxu0
    %v155 = vadd.f32 %v44, %v154
    %156 = vmatmul.f32.gmra.mxu0 %v93
    %v157 = vpop.f32.mrf.mxu0
    %v158 = vadd.f32 %v44, %v157
    %159 = vdwg.mxu0
    %v160 = vmax.f32 %v113, 0.0
    %v161 = vmax.f32 %v116, 0.0
    %v162 = vmax.f32 %v119, 0.0
    %v163 = vmax.f32 %v122, 0.0
    %v164 = vmax.f32 %v125, 0.0
    %v165 = vmax.f32 %v128, 0.0
    %v166 = vmax.f32 %v131, 0.0
    %v167 = vmax.f32 %v134, 0.0
    %v168 = vmax.f32 %v137, 0.0
    %v169 = vmax.f32 %v140, 0.0
    %v170 = vmax.f32 %v143, 0.0
    %v171 = vmax.f32 %v146, 0.0
    %v172 = vmax.f32 %v149, 0.0
    %v173 = vmax.f32 %v152, 0.0
    %v174 = vmax.f32 %v155, 0.0
    %v175 = vmax.f32 %v158, 0.0
    %v176 = vld [vmem:[%s3] sm:$0x1]
    %v178 = vperm.slane %v176, 0
    %v180 = vmul.f32 %v160, %v178
    %v181 = vmul.f32 %v161, %v178
    %v182 = vmul.f32 %v162, %v178
    %v183 = vmul.f32 %v163, %v178
    %v184 = vmul.f32 %v164, %v178
    %v185 = vmul.f32 %v165, %v178
    %v186 = vmul.f32 %v166, %v178
    %v187 = vmul.f32 %v167, %v178
    %v188 = vmul.f32 %v168, %v178
    %v189 = vmul.f32 %v169, %v178
    %v190 = vmul.f32 %v170, %v178
    %v191 = vmul.f32 %v171, %v178
    %v192 = vmul.f32 %v172, %v178
    %v193 = vmul.f32 %v173, %v178
    %v194 = vmul.f32 %v174, %v178
    %v195 = vmul.f32 %v175, %v178
    %196 = vadd.xlane.f32.xlu0 %v180
    %v197 = vpop.xlane.xlu0 %196
    %198 = vadd.xlane.f32.xlu0 %v181
    %v199 = vpop.xlane.xlu0 %198
    %200 = vadd.xlane.f32.xlu0 %v182
    %v201 = vpop.xlane.xlu0 %200
    %202 = vadd.xlane.f32.xlu0 %v183
    %v203 = vpop.xlane.xlu0 %202
    %204 = vadd.xlane.f32.xlu0 %v184
    %v205 = vpop.xlane.xlu0 %204
    %206 = vadd.xlane.f32.xlu0 %v185
    %v207 = vpop.xlane.xlu0 %206
    %208 = vadd.xlane.f32.xlu0 %v186
    %v209 = vpop.xlane.xlu0 %208
    %210 = vadd.xlane.f32.xlu0 %v187
    %v211 = vpop.xlane.xlu0 %210
    %212 = vadd.xlane.f32.xlu0 %v188
    %v213 = vpop.xlane.xlu0 %212
    %214 = vadd.xlane.f32.xlu0 %v189
    %v215 = vpop.xlane.xlu0 %214
    %216 = vadd.xlane.f32.xlu0 %v190
    %v217 = vpop.xlane.xlu0 %216
    %218 = vadd.xlane.f32.xlu0 %v191
    %v219 = vpop.xlane.xlu0 %218
    %220 = vadd.xlane.f32.xlu0 %v192
    %v221 = vpop.xlane.xlu0 %220
    %222 = vadd.xlane.f32.xlu0 %v193
    %v223 = vpop.xlane.xlu0 %222
    %224 = vadd.xlane.f32.xlu0 %v194
    %v225 = vpop.xlane.xlu0 %224
    %226 = vadd.xlane.f32.xlu0 %v195
    %v227 = vpop.xlane.xlu0 %226
    %s228 = sld [smem:[#allocation2]]
    %v229 = vstv %s228
    %v230 = vadd.f32 %v197, %v229
    %v231 = vadd.f32 %v199, %v229
    %v232 = vadd.f32 %v201, %v229
    %v233 = vadd.f32 %v203, %v229
    %v234 = vadd.f32 %v205, %v229
    %v235 = vadd.f32 %v207, %v229
    %v236 = vadd.f32 %v209, %v229
    %v237 = vadd.f32 %v211, %v229
    %v238 = vadd.f32 %v213, %v229
    %v239 = vadd.f32 %v215, %v229
    %v240 = vadd.f32 %v217, %v229
    %v241 = vadd.f32 %v219, %v229
    %v242 = vadd.f32 %v221, %v229
    %v243 = vadd.f32 %v223, %v229
    %v244 = vadd.f32 %v225, %v229
    %v245 = vadd.f32 %v227, %v229
    %v246 = vxor.u32 %v230, 2147483648
    %v247 = vxor.u32 %v231, 2147483648
    %v248 = vxor.u32 %v232, 2147483648
    %v249 = vxor.u32 %v233, 2147483648
    %v250 = vxor.u32 %v234, 2147483648
    %v251 = vxor.u32 %v235, 2147483648
    %v252 = vxor.u32 %v236, 2147483648
    %v253 = vxor.u32 %v237, 2147483648
    %v254 = vxor.u32 %v238, 2147483648
    %v255 = vxor.u32 %v239, 2147483648
    %v256 = vxor.u32 %v240, 2147483648
    %v257 = vxor.u32 %v241, 2147483648
    %v258 = vxor.u32 %v242, 2147483648
    %v259 = vxor.u32 %v243, 2147483648
    %v260 = vxor.u32 %v244, 2147483648
    %v261 = vxor.u32 %v245, 2147483648
    %v262 = vmul.f32 %v246, 1.442695
    %v263 = vpow.pop %v262
    %v264 = vmul.f32 %v247, 1.442695
    %v265 = vpow.pop %v264
    %v266 = vmul.f32 %v248, 1.442695
    %v267 = vpow.pop %v266
    %v268 = vmul.f32 %v249, 1.442695
    %v269 = vpow.pop %v268
    %v270 = vmul.f32 %v250, 1.442695
    %v271 = vpow.pop %v270
    %v272 = vmul.f32 %v251, 1.442695
    %v273 = vpow.pop %v272
    %v274 = vmul.f32 %v252, 1.442695
    %v275 = vpow.pop %v274
    %v276 = vmul.f32 %v253, 1.442695
    %v277 = vpow.pop %v276
    %v278 = vmul.f32 %v254, 1.442695
    %v279 = vpow.pop %v278
    %v280 = vmul.f32 %v255, 1.442695
    %v281 = vpow.pop %v280
    %v282 = vmul.f32 %v256, 1.442695
    %v283 = vpow.pop %v282
    %v284 = vmul.f32 %v257, 1.442695
    %v285 = vpow.pop %v284
    %v286 = vmul.f32 %v258, 1.442695
    %v287 = vpow.pop %v286
    %v288 = vmul.f32 %v259, 1.442695
    %v289 = vpow.pop %v288
    %v290 = vmul.f32 %v260, 1.442695
    %v291 = vpow.pop %v290
    %v292 = vmul.f32 %v261, 1.442695
    %v293 = vpow.pop %v292
    %v294 = vadd.f32 %v263, 1.0
    %v295 = vadd.f32 %v265, 1.0
    %v296 = vadd.f32 %v267, 1.0
    %v297 = vadd.f32 %v269, 1.0
    %v298 = vadd.f32 %v271, 1.0
    %v299 = vadd.f32 %v273, 1.0
    %v300 = vadd.f32 %v275, 1.0
    %v301 = vadd.f32 %v277, 1.0
    %v302 = vadd.f32 %v279, 1.0
    %v303 = vadd.f32 %v281, 1.0
    %v304 = vadd.f32 %v283, 1.0
    %v305 = vadd.f32 %v285, 1.0
    %v306 = vadd.f32 %v287, 1.0
    %v307 = vadd.f32 %v289, 1.0
    %v308 = vadd.f32 %v291, 1.0
    %v309 = vadd.f32 %v293, 1.0
    %v310 = vrcp.pop %v294
    %v311 = vmul.f32 %v294, %v310
    %v312 = vsub.f32 1.0, %v311
    %v313 = vmul.f32 %v310, %v312
    %v314 = vadd.f32 %v310, %v313
    %vm315 = vweird.f32 %v294
    %vm316 = vweird.f32 %v310
    %vm317 = vmor %vm315, %vm316
    %v318 = vsel %vm317, %v310, %v314
    %v319 = vand.u32 2147483647, %v294
    %vm320 = vcmp.eq.f32.partialorder %v319, 8.507059e+37
    %v321 = vand.u32 %v294, 2147483648
    %v322 = vor.u32 1.1754944e-38, %v321
    %v323 = vsel %vm320, %v322, %v318
    %v324 = vmul.f32 1.0, %v323
    %v325 = vrcp.pop %v295
    %v326 = vmul.f32 %v295, %v325
    %v327 = vsub.f32 1.0, %v326
    %v328 = vmul.f32 %v325, %v327
    %v329 = vadd.f32 %v325, %v328
    %vm330 = vweird.f32 %v295
    %vm331 = vweird.f32 %v325
    %vm332 = vmor %vm330, %vm331
    %v333 = vsel %vm332, %v325, %v329
    %v334 = vand.u32 2147483647, %v295
    %vm335 = vcmp.eq.f32.partialorder %v334, 8.507059e+37
    %v336 = vand.u32 %v295, 2147483648
    %v337 = vor.u32 1.1754944e-38, %v336
    %v338 = vsel %vm335, %v337, %v333
    %v339 = vmul.f32 1.0, %v338
    %v340 = vrcp.pop %v296
    %v341 = vmul.f32 %v296, %v340
    %v342 = vsub.f32 1.0, %v341
    %v343 = vmul.f32 %v340, %v342
    %v344 = vadd.f32 %v340, %v343
    %vm345 = vweird.f32 %v296
    %vm346 = vweird.f32 %v340
    %vm347 = vmor %vm345, %vm346
    %v348 = vsel %vm347, %v340, %v344
    %v349 = vand.u32 2147483647, %v296
    %vm350 = vcmp.eq.f32.partialorder %v349, 8.507059e+37
    %v351 = vand.u32 %v296, 2147483648
    %v352 = vor.u32 1.1754944e-38, %v351
    %v353 = vsel %vm350, %v352, %v348
    %v354 = vmul.f32 1.0, %v353
    %v355 = vrcp.pop %v297
    %v356 = vmul.f32 %v297, %v355
    %v357 = vsub.f32 1.0, %v356
    %v358 = vmul.f32 %v355, %v357
    %v359 = vadd.f32 %v355, %v358
    %vm360 = vweird.f32 %v297
    %vm361 = vweird.f32 %v355
    %vm362 = vmor %vm360, %vm361
    %v363 = vsel %vm362, %v355, %v359
    %v364 = vand.u32 2147483647, %v297
    %vm365 = vcmp.eq.f32.partialorder %v364, 8.507059e+37
    %v366 = vand.u32 %v297, 2147483648
    %v367 = vor.u32 1.1754944e-38, %v366
    %v368 = vsel %vm365, %v367, %v363
    %v369 = vmul.f32 1.0, %v368
    %v370 = vrcp.pop %v298
    %v371 = vmul.f32 %v298, %v370
    %v372 = vsub.f32 1.0, %v371
    %v373 = vmul.f32 %v370, %v372
    %v374 = vadd.f32 %v370, %v373
    %vm375 = vweird.f32 %v298
    %vm376 = vweird.f32 %v370
    %vm377 = vmor %vm375, %vm376
    %v378 = vsel %vm377, %v370, %v374
    %v379 = vand.u32 2147483647, %v298
    %vm380 = vcmp.eq.f32.partialorder %v379, 8.507059e+37
    %v381 = vand.u32 %v298, 2147483648
    %v382 = vor.u32 1.1754944e-38, %v381
    %v383 = vsel %vm380, %v382, %v378
    %v384 = vmul.f32 1.0, %v383
    %v385 = vrcp.pop %v299
    %v386 = vmul.f32 %v299, %v385
    %v387 = vsub.f32 1.0, %v386
    %v388 = vmul.f32 %v385, %v387
    %v389 = vadd.f32 %v385, %v388
    %vm390 = vweird.f32 %v299
    %vm391 = vweird.f32 %v385
    %vm392 = vmor %vm390, %vm391
    %v393 = vsel %vm392, %v385, %v389
    %v394 = vand.u32 2147483647, %v299
    %vm395 = vcmp.eq.f32.partialorder %v394, 8.507059e+37
    %v396 = vand.u32 %v299, 2147483648
    %v397 = vor.u32 1.1754944e-38, %v396
    %v398 = vsel %vm395, %v397, %v393
    %v399 = vmul.f32 1.0, %v398
    %v400 = vrcp.pop %v300
    %v401 = vmul.f32 %v300, %v400
    %v402 = vsub.f32 1.0, %v401
    %v403 = vmul.f32 %v400, %v402
    %v404 = vadd.f32 %v400, %v403
    %vm405 = vweird.f32 %v300
    %vm406 = vweird.f32 %v400
    %vm407 = vmor %vm405, %vm406
    %v408 = vsel %vm407, %v400, %v404
    %v409 = vand.u32 2147483647, %v300
    %vm410 = vcmp.eq.f32.partialorder %v409, 8.507059e+37
    %v411 = vand.u32 %v300, 2147483648
    %v412 = vor.u32 1.1754944e-38, %v411
    %v413 = vsel %vm410, %v412, %v408
    %v414 = vmul.f32 1.0, %v413
    %v415 = vrcp.pop %v301
    %v416 = vmul.f32 %v301, %v415
    %v417 = vsub.f32 1.0, %v416
    %v418 = vmul.f32 %v415, %v417
    %v419 = vadd.f32 %v415, %v418
    %vm420 = vweird.f32 %v301
    %vm421 = vweird.f32 %v415
    %vm422 = vmor %vm420, %vm421
    %v423 = vsel %vm422, %v415, %v419
    %v424 = vand.u32 2147483647, %v301
    %vm425 = vcmp.eq.f32.partialorder %v424, 8.507059e+37
    %v426 = vand.u32 %v301, 2147483648
    %v427 = vor.u32 1.1754944e-38, %v426
    %v428 = vsel %vm425, %v427, %v423
    %v429 = vmul.f32 1.0, %v428
    %v430 = vrcp.pop %v302
    %v431 = vmul.f32 %v302, %v430
    %v432 = vsub.f32 1.0, %v431
    %v433 = vmul.f32 %v430, %v432
    %v434 = vadd.f32 %v430, %v433
    %vm435 = vweird.f32 %v302
    %vm436 = vweird.f32 %v430
    %vm437 = vmor %vm435, %vm436
    %v438 = vsel %vm437, %v430, %v434
    %v439 = vand.u32 2147483647, %v302
    %vm440 = vcmp.eq.f32.partialorder %v439, 8.507059e+37
    %v441 = vand.u32 %v302, 2147483648
    %v442 = vor.u32 1.1754944e-38, %v441
    %v443 = vsel %vm440, %v442, %v438
    %v444 = vmul.f32 1.0, %v443
    %v445 = vrcp.pop %v303
    %v446 = vmul.f32 %v303, %v445
    %v447 = vsub.f32 1.0, %v446
    %v448 = vmul.f32 %v445, %v447
    %v449 = vadd.f32 %v445, %v448
    %vm450 = vweird.f32 %v303
    %vm451 = vweird.f32 %v445
    %vm452 = vmor %vm450, %vm451
    %v453 = vsel %vm452, %v445, %v449
    %v454 = vand.u32 2147483647, %v303
    %vm455 = vcmp.eq.f32.partialorder %v454, 8.507059e+37
    %v456 = vand.u32 %v303, 2147483648
    %v457 = vor.u32 1.1754944e-38, %v456
    %v458 = vsel %vm455, %v457, %v453
    %v459 = vmul.f32 1.0, %v458
    %v460 = vrcp.pop %v304
    %v461 = vmul.f32 %v304, %v460
    %v462 = vsub.f32 1.0, %v461
    %v463 = vmul.f32 %v460, %v462
    %v464 = vadd.f32 %v460, %v463
    %vm465 = vweird.f32 %v304
    %vm466 = vweird.f32 %v460
    %vm467 = vmor %vm465, %vm466
    %v468 = vsel %vm467, %v460, %v464
    %v469 = vand.u32 2147483647, %v304
    %vm470 = vcmp.eq.f32.partialorder %v469, 8.507059e+37
    %v471 = vand.u32 %v304, 2147483648
    %v472 = vor.u32 1.1754944e-38, %v471
    %v473 = vsel %vm470, %v472, %v468
    %v474 = vmul.f32 1.0, %v473
    %v475 = vrcp.pop %v305
    %v476 = vmul.f32 %v305, %v475
    %v477 = vsub.f32 1.0, %v476
    %v478 = vmul.f32 %v475, %v477
    %v479 = vadd.f32 %v475, %v478
    %vm480 = vweird.f32 %v305
    %vm481 = vweird.f32 %v475
    %vm482 = vmor %vm480, %vm481
    %v483 = vsel %vm482, %v475, %v479
    %v484 = vand.u32 2147483647, %v305
    %vm485 = vcmp.eq.f32.partialorder %v484, 8.507059e+37
    %v486 = vand.u32 %v305, 2147483648
    %v487 = vor.u32 1.1754944e-38, %v486
    %v488 = vsel %vm485, %v487, %v483
    %v489 = vmul.f32 1.0, %v488
    %v490 = vrcp.pop %v306
    %v491 = vmul.f32 %v306, %v490
    %v492 = vsub.f32 1.0, %v491
    %v493 = vmul.f32 %v490, %v492
    %v494 = vadd.f32 %v490, %v493
    %vm495 = vweird.f32 %v306
    %vm496 = vweird.f32 %v490
    %vm497 = vmor %vm495, %vm496
    %v498 = vsel %vm497, %v490, %v494
    %v499 = vand.u32 2147483647, %v306
    %vm500 = vcmp.eq.f32.partialorder %v499, 8.507059e+37
    %v501 = vand.u32 %v306, 2147483648
    %v502 = vor.u32 1.1754944e-38, %v501
    %v503 = vsel %vm500, %v502, %v498
    %v504 = vmul.f32 1.0, %v503
    %v505 = vrcp.pop %v307
    %v506 = vmul.f32 %v307, %v505
    %v507 = vsub.f32 1.0, %v506
    %v508 = vmul.f32 %v505, %v507
    %v509 = vadd.f32 %v505, %v508
    %vm510 = vweird.f32 %v307
    %vm511 = vweird.f32 %v505
    %vm512 = vmor %vm510, %vm511
    %v513 = vsel %vm512, %v505, %v509
    %v514 = vand.u32 2147483647, %v307
    %vm515 = vcmp.eq.f32.partialorder %v514, 8.507059e+37
    %v516 = vand.u32 %v307, 2147483648
    %v517 = vor.u32 1.1754944e-38, %v516
    %v518 = vsel %vm515, %v517, %v513
    %v519 = vmul.f32 1.0, %v518
    %v520 = vrcp.pop %v308
    %v521 = vmul.f32 %v308, %v520
    %v522 = vsub.f32 1.0, %v521
    %v523 = vmul.f32 %v520, %v522
    %v524 = vadd.f32 %v520, %v523
    %vm525 = vweird.f32 %v308
    %vm526 = vweird.f32 %v520
    %vm527 = vmor %vm525, %vm526
    %v528 = vsel %vm527, %v520, %v524
    %v529 = vand.u32 2147483647, %v308
    %vm530 = vcmp.eq.f32.partialorder %v529, 8.507059e+37
    %v531 = vand.u32 %v308, 2147483648
    %v532 = vor.u32 1.1754944e-38, %v531
    %v533 = vsel %vm530, %v532, %v528
    %v534 = vmul.f32 1.0, %v533
    %v535 = vrcp.pop %v309
    %v536 = vmul.f32 %v309, %v535
    %v537 = vsub.f32 1.0, %v536
    %v538 = vmul.f32 %v535, %v537
    %v539 = vadd.f32 %v535, %v538
    %vm540 = vweird.f32 %v309
    %vm541 = vweird.f32 %v535
    %vm542 = vmor %vm540, %vm541
    %v543 = vsel %vm542, %v535, %v539
    %v544 = vand.u32 2147483647, %v309
    %vm545 = vcmp.eq.f32.partialorder %v544, 8.507059e+37
    %v546 = vand.u32 %v309, 2147483648
    %v547 = vor.u32 1.1754944e-38, %v546
    %v548 = vsel %vm545, %v547, %v543
    %v549 = vmul.f32 1.0, %v548
    %v550 = vmul.f32 %v324, 6.0
    %v551 = vmul.f32 %v339, 6.0
    %v552 = vmul.f32 %v354, 6.0
    %v553 = vmul.f32 %v369, 6.0
    %v554 = vmul.f32 %v384, 6.0
    %v555 = vmul.f32 %v399, 6.0
    %v556 = vmul.f32 %v414, 6.0
    %v557 = vmul.f32 %v429, 6.0
    %v558 = vmul.f32 %v444, 6.0
    %v559 = vmul.f32 %v459, 6.0
    %v560 = vmul.f32 %v474, 6.0
    %v561 = vmul.f32 %v489, 6.0
    %v562 = vmul.f32 %v504, 6.0
    %v563 = vmul.f32 %v519, 6.0
    %v564 = vmul.f32 %v534, 6.0
    %v565 = vmul.f32 %v549, 6.0
    %v566 = vadd.f32 %v550, -3.0
    %v567 = vadd.f32 %v551, -3.0
    %v568 = vadd.f32 %v552, -3.0
    %v569 = vadd.f32 %v553, -3.0
    %v570 = vadd.f32 %v554, -3.0
    %v571 = vadd.f32 %v555, -3.0
    %v572 = vadd.f32 %v556, -3.0
    %v573 = vadd.f32 %v557, -3.0
    %v574 = vadd.f32 %v558, -3.0
    %v575 = vadd.f32 %v559, -3.0
    %v576 = vadd.f32 %v560, -3.0
    %v577 = vadd.f32 %v561, -3.0
    %v578 = vadd.f32 %v562, -3.0
    %v579 = vadd.f32 %v563, -3.0
    %v580 = vadd.f32 %v564, -3.0
    %v581 = vadd.f32 %v565, -3.0
    %v598 = vlaneseq
    %v599 = vand.u32 %v598, 127
    %v600 = vperm.slane %v566, %v599
    %v601 = vadd.s32 %v599, 4294967288
    %v602 = vperm.slane %v567, %v601
    %vm603 = vcmask 130112
    %v604 = vsel %vm603, %v602, %v600
    %v605 = vadd.s32 %v599, 4294967280
    %v606 = vperm.slane %v568, %v605
    %vm607 = vcmask 195712
    %v608 = vsel %vm607, %v606, %v604
    %v609 = vadd.s32 %v599, 4294967272
    %v610 = vperm.slane %v569, %v609
    %vm611 = vcmask 261312
    %v612 = vsel %vm611, %v610, %v608
    %v613 = vadd.s32 %v599, 4294967264
    %v614 = vperm.slane %v570, %v613
    %vm615 = vcmask 326912
    %v616 = vsel %vm615, %v614, %v612
    %v617 = vadd.s32 %v599, 4294967256
    %v618 = vperm.slane %v571, %v617
    %vm619 = vcmask 392512
    %v620 = vsel %vm619, %v618, %v616
    %v621 = vadd.s32 %v599, 4294967248
    %v622 = vperm.slane %v572, %v621
    %vm623 = vcmask 458112
    %v624 = vsel %vm623, %v622, %v620
    %v625 = vadd.s32 %v599, 4294967240
    %v626 = vperm.slane %v573, %v625
    %vm627 = vcmask 523712
    %v628 = vsel %vm627, %v626, %v624
    %v629 = vadd.s32 %v599, 4294967232
    %v630 = vperm.slane %v574, %v629
    %vm631 = vcmask 589312
    %v632 = vsel %vm631, %v630, %v628
    %v633 = vadd.s32 %v599, 4294967224
    %v634 = vperm.slane %v575, %v633
    %vm635 = vcmask 654912
    %v636 = vsel %vm635, %v634, %v632
    %v637 = vadd.s32 %v599, 4294967216
    %v638 = vperm.slane %v576, %v637
    %vm639 = vcmask 720512
    %v640 = vsel %vm639, %v638, %v636
    %v641 = vadd.s32 %v599, 4294967208
    %v642 = vperm.slane %v577, %v641
    %vm643 = vcmask 786112
    %v644 = vsel %vm643, %v642, %v640
    %v645 = vadd.s32 %v599, 4294967200
    %v646 = vperm.slane %v578, %v645
    %vm647 = vcmask 851712
    %v648 = vsel %vm647, %v646, %v644
    %v649 = vadd.s32 %v599, 4294967192
    %v650 = vperm.slane %v579, %v649
    %vm651 = vcmask 917312
    %v652 = vsel %vm651, %v650, %v648
    %v653 = vadd.s32 %v599, 4294967184
    %v654 = vperm.slane %v580, %v653
    %vm655 = vcmask 982912
    %v656 = vsel %vm655, %v654, %v652
    %v657 = vadd.s32 %v599, 4294967176
    %v658 = vperm.slane %v581, %v657
    %vm659 = vcmask 1048512
    %v660 = vsel %vm659, %v658, %v656
    %662 = vst [vmem:[#allocation3] sm:$0x1] %v660
    // Predicated region
    $region22: #{tpu_custom_call.1} parent=1 // pred_check
      _
    $region23: #{tpu_custom_call.1} parent=1 // pred_check_branch
      %664 = sbr.rel (0) target = $region25
    $region24: #{tpu_custom_call.1} parent=1 // pred_region
      %666 = vsyncadd [#allocation4], 0
      %s668 = sshll.u32 [#allocation3], 4
      %s669 = int_to_ptr.vmem [resolvable:$true] %s668
      %s670 = sshll.u32 %s5, 4
      %s671 = int_to_ptr.hbm [resolvable:$true] %s670
      %673 = dma.vmem_to_hbm [thread:$0]  %s669, 16, %s671, [#allocation4]
    $region25: #{tpu_custom_call.1} parent=1 // pred_fallthru
      _
    // Predicated region
    $region26: #{tpu_custom_call.1} parent=1 // pred_check
      _
    $region27: #{tpu_custom_call.1} parent=1 // pred_check_branch
      %675 = sbr.rel (0) target = $region29
    $region28: #{tpu_custom_call.1} parent=1 // pred_region
      %677 = dma.done [#allocation4], 16
    $region29: #{tpu_custom_call.1} parent=1 // pred_fallthru
      _
    %678 = vsyncpa [#allocation4], 1

</llo_original>
